<compile_context>
chip_gen: v7x
topology: tpu7x:2x2x1
jax: 0.10.0
libtpu: 0.0.40
codegen_flags: <defaults>
</compile_context>

<pallas_src>
import jax
import jax.numpy as jnp
from jax.experimental import pallas as pl
from jax.experimental.pallas import tpu as pltpu

FOLD = 4  # real rows folded into the lane dimension (4*F = 128 lanes for F=32)


def netwind_kernel(x_ref, w1_ref, b1_ref, w2_ref, b2_ref, cap_ref, o_ref):
    # Hoist constant (1, .) operands once per body invocation.
    b1 = b1_ref[...]          # (1, FOLD*H) f32
    b2 = b2_ref[...]          # (1, FOLD*O) f32
    cap = cap_ref[...]        # (1, FOLD*O) f32

    # x is DMA'd as f32 (4 B/elem, single HBM pass); cast to bf16 on the VPU
    # right before the MXU push.
    x = x_ref[...].astype(jnp.bfloat16)

    # Layer 1: bf16 x bf16 on the MXU, f32 accumulation; f32 epilogue on VPU.
    h = jnp.dot(x, w1_ref[...], preferred_element_type=jnp.float32)
    h = jnp.maximum(h + b1, 0.0)

    # Layer 2: bf16 activations on the MXU, f32 accumulation.
    z = jnp.dot(h.astype(jnp.bfloat16), w2_ref[...],
                preferred_element_type=jnp.float32)
    z = z + b2

    # Prescription layer: sigmoid scaling * fixed capacity (f32 VPU/EUP),
    # stored as bf16 to halve output writeback.
    o_ref[...] = (jax.nn.sigmoid(z) * cap).astype(o_ref.dtype)


def _block_diag(w, fold):
    """(K, N) -> (fold*K, fold*N) block-diagonal replication of w."""
    K, N = w.shape
    eye = jnp.eye(fold, dtype=w.dtype)
    bd = eye[:, :, None, None] * w[None, None, :, :]   # (fold, fold, K, N)
    return bd.transpose(0, 2, 1, 3).reshape(fold * K, fold * N)


def prepare_netwind_params(w1, b1, w2, b2, capacity, fold=FOLD):
    """One-time weight/bias prep (hoisted out of the per-call path)."""
    w1 = jnp.asarray(w1, jnp.float32)
    w2 = jnp.asarray(w2, jnp.float32)
    return {
        "fold": fold,
        "w1": _block_diag(w1, fold).astype(jnp.bfloat16),            # (fF, fH)
        "w2": _block_diag(w2, fold).astype(jnp.bfloat16),            # (fH, fO)
        "b1": jnp.tile(jnp.asarray(b1, jnp.float32), (1, fold)),     # (1, fH)
        "b2": jnp.tile(jnp.asarray(b2, jnp.float32), (1, fold)),     # (1, fO)
        "cap": jnp.tile(jnp.asarray(capacity, jnp.float32), (1, fold)),
        "F": w1.shape[0],
        "O": w2.shape[1],
    }


def _choose_tile(folded_B, block_rows):
    """Pick a sublane-aligned tile that yields >= 2 grid steps when possible
    (keeps both v7x TensorCores busy) and never exceeds block_rows."""
    if folded_B <= 8:
        return folded_B                       # single full-extent block
    half = pl.cdiv(folded_B, 2)
    half_aligned = pl.cdiv(half, 8) * 8       # sublane multiple
    tile = min(block_rows, half_aligned)
    return max(8, (tile // 8) * 8)


def netwind_forward(x, params, *, block_rows=1024, out_dtype=jnp.bfloat16):
    """x: (B, F) f32.  Returns (B, 6) in out_dtype (bf16 by default)."""
    fold = params["fold"]
    w1_f, b1_f = params["w1"], params["b1"]
    w2_f, b2_f, cap_f = params["w2"], params["b2"], params["cap"]
    B, F = x.shape
    H4 = w1_f.shape[1]                 # fold * hidden
    O4 = w2_f.shape[1]                 # fold * out
    O = params["O"]

    # Pad only to a multiple of FOLD (<= fold-1 rows); no-op when B % fold == 0.
    B_pad = pl.cdiv(B, fold) * fold
    if B_pad != B:
        x = jnp.pad(x, ((0, B_pad - B), (0, 0)))
    folded_B = B_pad // fold
    x_f = x.reshape(folded_B, fold * F)     # contiguous row-major reshape: free

    tile = _choose_tile(folded_B, block_rows)
    grid_steps = pl.cdiv(folded_B, tile)    # ragged last block masked by Pallas

    cost = pl.CostEstimate(
        flops=2 * folded_B * (fold * F * H4 + H4 * O4),
        transcendentals=folded_B * O4,
        bytes_accessed=(x_f.size * x_f.dtype.itemsize
                        + (w1_f.size + w2_f.size) * 2
                        + (b1_f.size + b2_f.size + cap_f.size) * 4
                        + folded_B * O4 * jnp.dtype(out_dtype).itemsize),
    )

    out_folded = pl.pallas_call(
        netwind_kernel,
        out_shape=jax.ShapeDtypeStruct((folded_B, O4), out_dtype),
        grid_spec=pl.GridSpec(
            grid=(grid_steps,),
            in_specs=[
                pl.BlockSpec((tile, fold * F), lambda i: (i, 0)),   # x tile (f32)
                pl.BlockSpec((fold * F, H4), lambda i: (0, 0)),     # W1 (resident)
                pl.BlockSpec((1, H4), lambda i: (0, 0)),            # b1
                pl.BlockSpec((H4, O4), lambda i: (0, 0)),           # W2
                pl.BlockSpec((1, O4), lambda i: (0, 0)),            # b2
                pl.BlockSpec((1, O4), lambda i: (0, 0)),            # capacity
            ],
            out_specs=pl.BlockSpec((tile, O4), lambda i: (i, 0)),
        ),
        compiler_params=pltpu.CompilerParams(
            dimension_semantics=("parallel",),
        ),
        cost_estimate=cost,
    )(x_f, w1_f, b1_f, w2_f, b2_f, cap_f)

    # Un-fold (contiguous reshape, free) and trim any padded rows.
    return out_folded.reshape(B_pad, O)[:B]


def init_params(key, infeatures, hidden=64, out=6):
    """Deterministic init mimicking torch.nn.Linear defaults; weights already
    transposed to (in, out)."""
    k1, k2, k3, k4 = jax.random.split(key, 4)
    bound1 = 1.0 / jnp.sqrt(infeatures)
    w1 = jax.random.uniform(k1, (infeatures, hidden), jnp.float32, -bound1, bound1)
    b1 = jax.random.uniform(k2, (1, hidden), jnp.float32, -bound1, bound1)
    bound2 = 1.0 / jnp.sqrt(hidden)
    w2 = jax.random.uniform(k3, (hidden, out), jnp.float32, -bound2, bound2)
    b2 = jax.random.uniform(k4, (1, out), jnp.float32, -bound2, bound2)
    capacity = jnp.array([[1.0, 0.5, 1.0, 1.0, 1.0, 0.5]], dtype=jnp.float32)
    return w1, b1, w2, b2, capacity


def netwind_ref(x, w1, b1, w2, b2, capacity):
    h = jnp.maximum(x @ w1 + b1, 0.0)
    z = h @ w2 + b2
    return jax.nn.sigmoid(z) * capacity


if __name__ == "__main__":
    key = jax.random.PRNGKey(0)
    kx1, kx2, kx3, kp = jax.random.split(key, 4)

    F = 32
    w1, b1, w2, b2, capacity = init_params(kp, F)
    params = prepare_netwind_params(w1, b1, w2, b2, capacity)  # one-time prep

    # Case 1: tiny batch, single full-extent block.
    B1 = 8
    x1 = jax.random.normal(kx1, (B1, F), dtype=jnp.float32)
    fwd1 = jax.jit(lambda x: netwind_forward(x, params))
    out1 = jax.block_until_ready(fwd1(x1))
    ref1 = netwind_ref(x1, w1, b1, w2, b2, capacity)
    assert out1.shape == (B1, 6)
    assert jnp.allclose(out1, ref1, atol=2e-2, rtol=2e-2), "mismatch (small)"

    # Case 2: B not a multiple of 4 (exercises minimal pad) + small tile so the
    # grid has several steps with a ragged (masked) last block.
    B2 = 250
    x2 = jax.random.normal(kx2, (B2, F), dtype=jnp.float32)
    fwd2 = jax.jit(lambda x: netwind_forward(x, params, block_rows=16))
    out2 = jax.block_until_ready(fwd2(x2))
    ref2 = netwind_ref(x2, w1, b1, w2, b2, capacity)
    assert out2.shape == (B2, 6)
    assert jnp.allclose(out2, ref2, atol=2e-2, rtol=2e-2), "mismatch (tiled)"

    # Case 3: default block_rows -> tile chosen to give exactly 2 grid steps
    # (the v7x dual-TensorCore path).
    B3 = 200
    x3 = jax.random.normal(kx3, (B3, F), dtype=jnp.float32)
    fwd3 = jax.jit(lambda x: netwind_forward(x, params))
    out3 = jax.block_until_ready(fwd3(x3))
    ref3 = netwind_ref(x3, w1, b1, w2, b2, capacity)
    assert out3.shape == (B3, 6)
    assert jnp.allclose(out3, ref3, atol=2e-2, rtol=2e-2), "mismatch (2-step)"

    print("KERNEL_OK")
</pallas_src>

<mosaic_0001>
module attributes {stable_mosaic.version = 11 : i64} {
  func.func @netwind_kernel(%arg0: i32, %arg1: memref<2x128xf32, #tpu.memory_space<vmem>>, %arg2: memref<128x256xbf16, #tpu.memory_space<vmem>>, %arg3: memref<1x256xf32, #tpu.memory_space<vmem>>, %arg4: memref<256x24xbf16, #tpu.memory_space<vmem>>, %arg5: memref<1x24xf32, #tpu.memory_space<vmem>>, %arg6: memref<1x24xf32, #tpu.memory_space<vmem>>, %arg7: memref<2x24xbf16, #tpu.memory_space<vmem>>) attributes {dimension_semantics = [#tpu.dimension_semantics<parallel>], iteration_bounds = array<i64: 1>, scalar_prefetch = 0 : i64, scratch_operands = 0 : i64, tpu.core_type = #tpu.core_type<tc>, window_params = [{transform_indices = @transform_0, window_bounds = array<i64: 2, 128>}, {pipeline_mode = #tpu.pipeline_mode<synchronous>, transform_indices = @transform_1, window_bounds = array<i64: 128, 256>}, {pipeline_mode = #tpu.pipeline_mode<synchronous>, transform_indices = @transform_2, window_bounds = array<i64: 1, 256>}, {pipeline_mode = #tpu.pipeline_mode<synchronous>, transform_indices = @transform_3, window_bounds = array<i64: 256, 24>}, {pipeline_mode = #tpu.pipeline_mode<synchronous>, transform_indices = @transform_4, window_bounds = array<i64: 1, 24>}, {pipeline_mode = #tpu.pipeline_mode<synchronous>, transform_indices = @transform_5, window_bounds = array<i64: 1, 24>}, {transform_indices = @transform_6, window_bounds = array<i64: 2, 24>}]} {
    %c0 = arith.constant 0 : index
    %c0_0 = arith.constant 0 : index
    %0 = vector.load %arg3[%c0, %c0_0] : memref<1x256xf32, #tpu.memory_space<vmem>>, vector<1x256xf32>
    %c0_1 = arith.constant 0 : index
    %c0_2 = arith.constant 0 : index
    %1 = vector.load %arg5[%c0_1, %c0_2] : memref<1x24xf32, #tpu.memory_space<vmem>>, vector<1x24xf32>
    %c0_3 = arith.constant 0 : index
    %c0_4 = arith.constant 0 : index
    %2 = vector.load %arg6[%c0_3, %c0_4] : memref<1x24xf32, #tpu.memory_space<vmem>>, vector<1x24xf32>
    %c0_5 = arith.constant 0 : index
    %c0_6 = arith.constant 0 : index
    %3 = vector.load %arg1[%c0_5, %c0_6] : memref<2x128xf32, #tpu.memory_space<vmem>>, vector<2x128xf32>
    %4 = arith.truncf %3 : vector<2x128xf32> to vector<2x128xbf16>
    %c0_7 = arith.constant 0 : index
    %c0_8 = arith.constant 0 : index
    %5 = vector.load %arg2[%c0_7, %c0_8] : memref<128x256xbf16, #tpu.memory_space<vmem>>, vector<128x256xbf16>
    %cst = arith.constant dense<0.000000e+00> : vector<2x256xf32>
    %6 = tpu.matmul %4, %5, %cst {dimension_numbers = #tpu.dot_dimension_numbers<[1], [0], [0], [1], [0, 0, 1, 1], [], []>} : vector<2x128xbf16>, vector<128x256xbf16>, vector<2x256xf32> -> vector<2x256xf32>
    %7 = vector.broadcast %0 : vector<1x256xf32> to vector<2x256xf32>
    %8 = arith.addf %6, %7 : vector<2x256xf32>
    %cst_9 = arith.constant 0.000000e+00 : f32
    %9 = vector.broadcast %cst_9 : f32 to vector<2x256xf32>
    %10 = arith.maximumf %8, %9 : vector<2x256xf32>
    %11 = arith.truncf %10 : vector<2x256xf32> to vector<2x256xbf16>
    %c0_10 = arith.constant 0 : index
    %c0_11 = arith.constant 0 : index
    %12 = vector.load %arg4[%c0_10, %c0_11] : memref<256x24xbf16, #tpu.memory_space<vmem>>, vector<256x24xbf16>
    %cst_12 = arith.constant dense<0.000000e+00> : vector<2x24xf32>
    %13 = tpu.matmul %11, %12, %cst_12 {dimension_numbers = #tpu.dot_dimension_numbers<[1], [0], [0], [1], [0, 0, 1, 1], [], []>} : vector<2x256xbf16>, vector<256x24xbf16>, vector<2x24xf32> -> vector<2x24xf32>
    %14 = vector.broadcast %1 : vector<1x24xf32> to vector<2x24xf32>
    %15 = arith.addf %13, %14 : vector<2x24xf32>
    %16 = arith.negf %15 : vector<2x24xf32>
    %17 = math.exp %16 : vector<2x24xf32>
    %cst_13 = arith.constant 1.000000e+00 : f32
    %18 = vector.broadcast %cst_13 : f32 to vector<2x24xf32>
    %19 = arith.addf %18, %17 : vector<2x24xf32>
    %20 = arith.divf %18, %19 : vector<2x24xf32>
    %21 = vector.broadcast %2 : vector<1x24xf32> to vector<2x24xf32>
    %22 = arith.mulf %20, %21 : vector<2x24xf32>
    %23 = arith.truncf %22 : vector<2x24xf32> to vector<2x24xbf16>
    %c0_14 = arith.constant 0 : index
    %c0_15 = arith.constant 0 : index
    %24 = vector.load %arg7[%c0_14, %c0_15] : memref<2x24xbf16, #tpu.memory_space<vmem>>, vector<2x24xbf16>
    tpu.vector_store %arg7[%c0_14, %c0_15], %23 {strides = array<i32>} : memref<2x24xbf16, #tpu.memory_space<vmem>>, vector<2x24xbf16>,
    return
  }
  func.func @transform_0(%arg0: i32) -> (i32, i32) {
    %c0_i32 = arith.constant 0 : i32
    %c0_i32_0 = arith.constant 0 : i32
    return %arg0, %c0_i32 : i32, i32
  }
  func.func @transform_1(%arg0: i32) -> (i32, i32) {
    %c0_i32 = arith.constant 0 : i32
    %c0_i32_0 = arith.constant 0 : i32
    %c0_i32_1 = arith.constant 0 : i32
    return %c0_i32, %c0_i32_0 : i32, i32
  }
  func.func @transform_2(%arg0: i32) -> (i32, i32) {
    %c0_i32 = arith.constant 0 : i32
    %c0_i32_0 = arith.constant 0 : i32
    %c0_i32_1 = arith.constant 0 : i32
    return %c0_i32, %c0_i32_0 : i32, i32
  }
  func.func @transform_3(%arg0: i32) -> (i32, i32) {
    %c0_i32 = arith.constant 0 : i32
    %c0_i32_0 = arith.constant 0 : i32
    %c0_i32_1 = arith.constant 0 : i32
    return %c0_i32, %c0_i32_0 : i32, i32
  }
  func.func @transform_4(%arg0: i32) -> (i32, i32) {
    %c0_i32 = arith.constant 0 : i32
    %c0_i32_0 = arith.constant 0 : i32
    %c0_i32_1 = arith.constant 0 : i32
    return %c0_i32, %c0_i32_0 : i32, i32
  }
  func.func @transform_5(%arg0: i32) -> (i32, i32) {
    %c0_i32 = arith.constant 0 : i32
    %c0_i32_0 = arith.constant 0 : i32
    %c0_i32_1 = arith.constant 0 : i32
    return %c0_i32, %c0_i32_0 : i32, i32
  }
  func.func @transform_6(%arg0: i32) -> (i32, i32) {
    %c0_i32 = arith.constant 0 : i32
    %c0_i32_0 = arith.constant 0 : i32
    return %arg0, %c0_i32 : i32, i32
  }
}

</mosaic_0001>

<llo_original>
// kernel: _lambda_.1
$region0: #{_lambda_.1}
  #allocation0 [shape = 'u32[]', space=smem, size = 0x4, offset = 0x4, fixed_abs, tag = 'smem constant byte address 0x4 - core index']
  #allocation1 [shape = 'u32[144,128]{1,0:T(1,128)}', space=vmem, size = 0x12000, scoped, tag = 'internal scratch']
  %s0 = inlined_call_operand.vmem [shape: f32[2,128], index: 0, kind: input, shape index: {}]
  %s1 = inlined_call_operand.vmem [shape: bf16[128,256], index: 1, kind: input, shape index: {}]
  %s2 = inlined_call_operand.vmem [shape: f32[1,256], index: 2, kind: input, shape index: {}]
  %s3 = inlined_call_operand.vmem [shape: bf16[256,24], index: 3, kind: input, shape index: {}]
  %s4 = inlined_call_operand.vmem [shape: f32[1,24], index: 4, kind: input, shape index: {}]
  %s5 = inlined_call_operand.vmem [shape: f32[1,24], index: 5, kind: input, shape index: {}]
  %s6 = inlined_call_operand.vmem [shape: bf16[2,24], index: 6, kind: output, shape index: {}]
  %s7 = sld [smem:[#allocation0]]
  $region34: #{_lambda_.1} parent=0
    _
  %s9 = ssub.s32 1, %s7
  %s10 = scalar_select 0, %s9, %s7
  // Predicated region
  $region2: #{_lambda_.1} parent=0 // pred_check
    _
  $region3: #{_lambda_.1} parent=0 // pred_check_branch
    %12 = sbr.rel (0) target = $region5
  $region4: #{_lambda_.1} parent=0 // pred_region
    _
  $region5: #{_lambda_.1} parent=0 // pred_fallthru
    _
  // Predicated region
  $region6: #{_lambda_.1} parent=0 // pred_check
    _
  $region7: #{_lambda_.1} parent=0 // pred_check_branch
    %14 = sbr.rel (0) target = $region9
  $region8: #{_lambda_.1} parent=0 // pred_region
    _
  $region9: #{_lambda_.1} parent=0 // pred_fallthru
    _
  // Predicated region
  $region10: #{_lambda_.1} parent=0 // pred_check
    _
  $region11: #{_lambda_.1} parent=0 // pred_check_branch
    %16 = sbr.rel (0) target = $region13
  $region12: #{_lambda_.1} parent=0 // pred_region
    _
  $region13: #{_lambda_.1} parent=0 // pred_fallthru
    _
  // Predicated region
  $region14: #{_lambda_.1} parent=0 // pred_check
    _
  $region15: #{_lambda_.1} parent=0 // pred_check_branch
    %18 = sbr.rel (0) target = $region17
  $region16: #{_lambda_.1} parent=0 // pred_region
    _
  $region17: #{_lambda_.1} parent=0 // pred_fallthru
    _
  // Predicated region
  $region18: #{_lambda_.1} parent=0 // pred_check
    _
  $region19: #{_lambda_.1} parent=0 // pred_check_branch
    %20 = sbr.rel (0) target = $region21
  $region20: #{_lambda_.1} parent=0 // pred_region
    _
  $region21: #{_lambda_.1} parent=0 // pred_fallthru
    _
  // Predicated region
  $region22: #{_lambda_.1} parent=0 // pred_check
    _
  $region23: #{_lambda_.1} parent=0 // pred_check_branch
    %22 = sbr.rel (0) target = $region25
  $region24: #{_lambda_.1} parent=0 // pred_region
    _
  $region25: #{_lambda_.1} parent=0 // pred_fallthru
    _
  %v24 = vld [vmem:[%s2] sm:$0x3]
  %v25 = vld [vmem:[%s4] sm:$0x1]
  %v26 = vld [vmem:[%s5] sm:$0x1]
  %v27 = vld [vmem:[%s0] sm:$0x3]
  %v28 = vpack.c.bf16 %v27, %v27
  %v29 = vld [vmem:[%s1] sm:$0xff]
  %v30 = vld [vmem:[%s1 + $0x8] sm:$0xff]
  %v31 = vld [vmem:[%s1 + $0x10] sm:$0xff]
  %v32 = vld [vmem:[%s1 + $0x18] sm:$0xff]
  %v33 = vld [vmem:[%s1 + $0x20] sm:$0xff]
  %v34 = vld [vmem:[%s1 + $0x28] sm:$0xff]
  %v35 = vld [vmem:[%s1 + $0x30] sm:$0xff]
  %v36 = vld [vmem:[%s1 + $0x38] sm:$0xff]
  %v37 = vld [vmem:[%s1 + $0x40] sm:$0xff]
  %v38 = vld [vmem:[%s1 + $0x48] sm:$0xff]
  %v39 = vld [vmem:[%s1 + $0x50] sm:$0xff]
  %v40 = vld [vmem:[%s1 + $0x58] sm:$0xff]
  %v41 = vld [vmem:[%s1 + $0x60] sm:$0xff]
  %v42 = vld [vmem:[%s1 + $0x68] sm:$0xff]
  %v43 = vld [vmem:[%s1 + $0x70] sm:$0xff]
  %v44 = vld [vmem:[%s1 + $0x78] sm:$0xff]
  %v46 = vlaneseq
  %v47 = vshrl.u32 %v46, 7
  %v48 = vsub.s32 0, %v47
  %v49 = vrot.slane %v24, %v48
  %v50 = vlaneseq
  %v51 = vshrl.u32 %v50, 7
  %v52 = vsub.s32 1, %v51
  %v53 = vrot.slane %v24, %v52
  %v72 = vunpack.c.l.b16 %v29
  %v73 = vunpack.c.h.b16 %v29
  %v74 = vunpack.c.l.b16 %v30
  %v75 = vunpack.c.h.b16 %v30
  %v76 = vunpack.c.l.b16 %v31
  %v77 = vunpack.c.h.b16 %v31
  %v78 = vunpack.c.l.b16 %v32
  %v79 = vunpack.c.h.b16 %v32
  %v80 = vunpack.c.l.b16 %v33
  %v81 = vunpack.c.h.b16 %v33
  %v82 = vunpack.c.l.b16 %v34
  %v83 = vunpack.c.h.b16 %v34
  %v84 = vunpack.c.l.b16 %v35
  %v85 = vunpack.c.h.b16 %v35
  %v86 = vunpack.c.l.b16 %v36
  %v87 = vunpack.c.h.b16 %v36
  %v88 = vunpack.c.l.b16 %v37
  %v89 = vunpack.c.h.b16 %v37
  %v90 = vunpack.c.l.b16 %v38
  %v91 = vunpack.c.h.b16 %v38
  %v92 = vunpack.c.l.b16 %v39
  %v93 = vunpack.c.h.b16 %v39
  %v94 = vunpack.c.l.b16 %v40
  %v95 = vunpack.c.h.b16 %v40
  %v96 = vunpack.c.l.b16 %v41
  %v97 = vunpack.c.h.b16 %v41
  %v98 = vunpack.c.l.b16 %v42
  %v99 = vunpack.c.h.b16 %v42
  %v100 = vunpack.c.l.b16 %v43
  %v101 = vunpack.c.h.b16 %v43
  %v102 = vunpack.c.l.b16 %v44
  %v103 = vunpack.c.h.b16 %v44
  %v104 = vpack.c.b16 %v74, %v72
  %v105 = vpack.c.b16 %v75, %v73
  %v106 = vpack.c.b16 %v78, %v76
  %v107 = vpack.c.b16 %v79, %v77
  %v108 = vpack.c.b16 %v82, %v80
  %v109 = vpack.c.b16 %v83, %v81
  %v110 = vpack.c.b16 %v86, %v84
  %v111 = vpack.c.b16 %v87, %v85
  %v112 = vpack.c.b16 %v90, %v88
  %v113 = vpack.c.b16 %v91, %v89
  %v114 = vpack.c.b16 %v94, %v92
  %v115 = vpack.c.b16 %v95, %v93
  %v116 = vpack.c.b16 %v98, %v96
  %v117 = vpack.c.b16 %v99, %v97
  %v118 = vpack.c.b16 %v102, %v100
  %v119 = vpack.c.b16 %v103, %v101
  %136 = vmatprep.subr.bf16.mxu0 %v105
  %137 = vmatpush1.bf16.msra.mxu0 %v104
  %138 = vmatprep.subr.bf16.mxu0 %v107
  %139 = vmatpush1.bf16.msra.mxu0 %v106
  %140 = vmatprep.subr.bf16.mxu0 %v109
  %141 = vmatpush1.bf16.msra.mxu0 %v108
  %142 = vmatprep.subr.bf16.mxu0 %v111
  %143 = vmatpush1.bf16.msra.mxu0 %v110
  %144 = vmatprep.subr.bf16.mxu0 %v113
  %145 = vmatpush1.bf16.msra.mxu0 %v112
  %146 = vmatprep.subr.bf16.mxu0 %v115
  %147 = vmatpush1.bf16.msra.mxu0 %v114
  %148 = vmatprep.subr.bf16.mxu0 %v117
  %149 = vmatpush1.bf16.msra.mxu0 %v116
  %150 = vmatprep.subr.bf16.mxu0 %v119
  %151 = vmatpush1.bf16.msra.mxu0 %v118
  %152 = vmatprep.subr.bf16.mxu0 0
  %153 = vmatpush1.bf16.msra.mxu0 0
  %154 = vmatprep.subr.bf16.mxu0 0
  %155 = vmatpush1.bf16.msra.mxu0 0
  %156 = vmatprep.subr.bf16.mxu0 0
  %157 = vmatpush1.bf16.msra.mxu0 0
  %158 = vmatprep.subr.bf16.mxu0 0
  %159 = vmatpush1.bf16.msra.mxu0 0
  %160 = vmatprep.subr.bf16.mxu0 0
  %161 = vmatpush1.bf16.msra.mxu0 0
  %162 = vmatprep.subr.bf16.mxu0 0
  %163 = vmatpush1.bf16.msra.mxu0 0
  %164 = vmatprep.subr.bf16.mxu0 0
  %165 = vmatpush1.bf16.msra.mxu0 0
  %166 = vmatprep.subr.bf16.mxu0 0
  %167 = vmatpush1.bf16.msra.mxu0 0
  %168 = vmatprep.mubr.bf16.mxu0 0
  %169 = vmatmul.mubr.bf16.gmra.mrb[0].mxu0 %v28
  %v170 = vpop.f32.mrb[0].mxu0
  %v171 = vadd.f32 %v49, %v170
  %v172 = vpop.f32.mrb[0].mxu0
  %v173 = vadd.f32 %v53, %v172
  %v174 = vpop.f32.mrb[0].mxu0
  %v175 = vpop.f32.mrb[0].mxu0
  %176 = vdwg.mxu0
  %v177 = vmax.f32 %v171, 0.0
  %v178 = vmax.f32 %v173, 0.0
  %v179 = vpack.c.bf16 %v177, %v177
  %v180 = vpack.c.bf16 %v178, %v178
  %v181 = vld [vmem:[%s3] sm:$0xf]
  %v182 = vld [vmem:[%s3 + $0x4] sm:$0xf]
  %v183 = vld [vmem:[%s3 + $0x8] sm:$0xf]
  %v184 = vld [vmem:[%s3 + $0xc] sm:$0xf]
  %v185 = vld [vmem:[%s3 + $0x10] sm:$0xf]
  %v186 = vld [vmem:[%s3 + $0x14] sm:$0xf]
  %v187 = vld [vmem:[%s3 + $0x18] sm:$0xf]
  %v188 = vld [vmem:[%s3 + $0x1c] sm:$0xf]
  %v189 = vld [vmem:[%s3 + $0x20] sm:$0xf]
  %v190 = vld [vmem:[%s3 + $0x24] sm:$0xf]
  %v191 = vld [vmem:[%s3 + $0x28] sm:$0xf]
  %v192 = vld [vmem:[%s3 + $0x2c] sm:$0xf]
  %v193 = vld [vmem:[%s3 + $0x30] sm:$0xf]
  %v194 = vld [vmem:[%s3 + $0x34] sm:$0xf]
  %v195 = vld [vmem:[%s3 + $0x38] sm:$0xf]
  %v196 = vld [vmem:[%s3 + $0x3c] sm:$0xf]
  %v197 = vld [vmem:[%s3 + $0x40] sm:$0xf]
  %v198 = vld [vmem:[%s3 + $0x44] sm:$0xf]
  %v199 = vld [vmem:[%s3 + $0x48] sm:$0xf]
  %v200 = vld [vmem:[%s3 + $0x4c] sm:$0xf]
  %v201 = vld [vmem:[%s3 + $0x50] sm:$0xf]
  %v202 = vld [vmem:[%s3 + $0x54] sm:$0xf]
  %v203 = vld [vmem:[%s3 + $0x58] sm:$0xf]
  %v204 = vld [vmem:[%s3 + $0x5c] sm:$0xf]
  %v205 = vld [vmem:[%s3 + $0x60] sm:$0xf]
  %v206 = vld [vmem:[%s3 + $0x64] sm:$0xf]
  %v207 = vld [vmem:[%s3 + $0x68] sm:$0xf]
  %v208 = vld [vmem:[%s3 + $0x6c] sm:$0xf]
  %v209 = vld [vmem:[%s3 + $0x70] sm:$0xf]
  %v210 = vld [vmem:[%s3 + $0x74] sm:$0xf]
  %v211 = vld [vmem:[%s3 + $0x78] sm:$0xf]
  %v212 = vld [vmem:[%s3 + $0x7c] sm:$0xf]
  %v214 = vlaneseq
  %v215 = vshrl.u32 %v214, 7
  %v216 = vsub.s32 0, %v215
  %v217 = vrot.slane %v25, %v216
  %v251 = vunpack.c.l.b16 %v181
  %v252 = vunpack.c.l.b16 %v182
  %v253 = vunpack.c.l.b16 %v183
  %v254 = vunpack.c.l.b16 %v184
  %v255 = vunpack.c.l.b16 %v185
  %v256 = vunpack.c.l.b16 %v186
  %v257 = vunpack.c.l.b16 %v187
  %v258 = vunpack.c.l.b16 %v188
  %v259 = vunpack.c.l.b16 %v189
  %v260 = vunpack.c.l.b16 %v190
  %v261 = vunpack.c.l.b16 %v191
  %v262 = vunpack.c.l.b16 %v192
  %v263 = vunpack.c.l.b16 %v193
  %v264 = vunpack.c.l.b16 %v194
  %v265 = vunpack.c.l.b16 %v195
  %v266 = vunpack.c.l.b16 %v196
  %v267 = vunpack.c.l.b16 %v197
  %v268 = vunpack.c.l.b16 %v198
  %v269 = vunpack.c.l.b16 %v199
  %v270 = vunpack.c.l.b16 %v200
  %v271 = vunpack.c.l.b16 %v201
  %v272 = vunpack.c.l.b16 %v202
  %v273 = vunpack.c.l.b16 %v203
  %v274 = vunpack.c.l.b16 %v204
  %v275 = vunpack.c.l.b16 %v205
  %v276 = vunpack.c.l.b16 %v206
  %v277 = vunpack.c.l.b16 %v207
  %v278 = vunpack.c.l.b16 %v208
  %v279 = vunpack.c.l.b16 %v209
  %v280 = vunpack.c.l.b16 %v210
  %v281 = vunpack.c.l.b16 %v211
  %v282 = vunpack.c.l.b16 %v212
  %v283 = vpack.c.b16 %v252, %v251
  %v284 = vpack.c.b16 %v254, %v253
  %v285 = vpack.c.b16 %v256, %v255
  %v286 = vpack.c.b16 %v258, %v257
  %v287 = vpack.c.b16 %v260, %v259
  %v288 = vpack.c.b16 %v262, %v261
  %v289 = vpack.c.b16 %v264, %v263
  %v290 = vpack.c.b16 %v266, %v265
  %v291 = vpack.c.b16 %v268, %v267
  %v292 = vpack.c.b16 %v270, %v269
  %v293 = vpack.c.b16 %v272, %v271
  %v294 = vpack.c.b16 %v274, %v273
  %v295 = vpack.c.b16 %v276, %v275
  %v296 = vpack.c.b16 %v278, %v277
  %v297 = vpack.c.b16 %v280, %v279
  %v298 = vpack.c.b16 %v282, %v281
  %315 = vmatprep.subr.bf16.mxu0 0
  %316 = vmatpush1.bf16.msra.mxu0 %v283
  %317 = vmatprep.subr.bf16.mxu0 0
  %318 = vmatpush1.bf16.msra.mxu0 %v284
  %319 = vmatprep.subr.bf16.mxu0 0
  %320 = vmatpush1.bf16.msra.mxu0 %v285
  %321 = vmatprep.subr.bf16.mxu0 0
  %322 = vmatpush1.bf16.msra.mxu0 %v286
  %323 = vmatprep.subr.bf16.mxu0 0
  %324 = vmatpush1.bf16.msra.mxu0 %v287
  %325 = vmatprep.subr.bf16.mxu0 0
  %326 = vmatpush1.bf16.msra.mxu0 %v288
  %327 = vmatprep.subr.bf16.mxu0 0
  %328 = vmatpush1.bf16.msra.mxu0 %v289
  %329 = vmatprep.subr.bf16.mxu0 0
  %330 = vmatpush1.bf16.msra.mxu0 %v290
  %331 = vmatprep.subr.bf16.mxu0 0
  %332 = vmatpush1.bf16.msra.mxu0 %v291
  %333 = vmatprep.subr.bf16.mxu0 0
  %334 = vmatpush1.bf16.msra.mxu0 %v292
  %335 = vmatprep.subr.bf16.mxu0 0
  %336 = vmatpush1.bf16.msra.mxu0 %v293
  %337 = vmatprep.subr.bf16.mxu0 0
  %338 = vmatpush1.bf16.msra.mxu0 %v294
  %339 = vmatprep.subr.bf16.mxu0 0
  %340 = vmatpush1.bf16.msra.mxu0 %v295
  %341 = vmatprep.subr.bf16.mxu0 0
  %342 = vmatpush1.bf16.msra.mxu0 %v296
  %343 = vmatprep.subr.bf16.mxu0 0
  %344 = vmatpush1.bf16.msra.mxu0 %v297
  %345 = vmatprep.subr.bf16.mxu0 0
  %346 = vmatpush1.bf16.msra.mxu0 %v298
  %347 = vmatprep.mubr.bf16.mxu0 %v180
  %348 = vmatmul.mubr.bf16.gmra.mrb[0].mxu0 %v179
  %v349 = vpop.f32.mrb[0].mxu0
  %v350 = vadd.f32 %v217, %v349
  %v351 = vpop.f32.mrb[0].mxu0
  %v352 = vpop.f32.mrb[0].mxu0
  %v353 = vpop.f32.mrb[0].mxu0
  %354 = vdwg.mxu0
  %v355 = vxor.u32 %v350, 2147483648
  %v356 = vmul.f32 %v355, 1.442695
  %v357 = vpow.pop %v356
  %v358 = vadd.f32 %v357, 1.0
  %v359 = vrcp.pop %v358
  %v360 = vmul.f32 1.0, %v359
  %v362 = vlaneseq
  %v363 = vshrl.u32 %v362, 7
  %v364 = vsub.s32 0, %v363
  %v365 = vrot.slane %v26, %v364
  %v367 = vmul.f32 %v360, %v365
  %v368 = vpack.c.bf16 %v367, %v367
  %vm369 = vcmask 188416
  %370 = vst.msk [vmem:[%s6] sm:$0x1] %vm369, %v368
  // Predicated region
  $region26: #{_lambda_.1} parent=0 // pred_check
    _
  $region27: #{_lambda_.1} parent=0 // pred_check_branch
    %372 = sbr.rel (0) target = $region29
  $region28: #{_lambda_.1} parent=0 // pred_region
    _
  $region29: #{_lambda_.1} parent=0 // pred_fallthru
    _
  // Predicated region
  $region30: #{_lambda_.1} parent=0 // pred_check
    _
  $region31: #{_lambda_.1} parent=0 // pred_check_branch
    %374 = sbr.rel (0) target = $region33
  $region32: #{_lambda_.1} parent=0 // pred_region
    _
  $region33: #{_lambda_.1} parent=0 // pred_fallthru
    _

</llo_original>
